<compile_context>
chip_gen: v5e
topology: v5e:2x2
jax: 0.10.0
libtpu: 0.0.40
codegen_flags: <defaults>
</compile_context>

<pallas_src>
import jax
import jax.numpy as jnp
from jax import lax
from jax.experimental import pallas as pl
from jax.experimental.pallas import tpu as pltpu

_SUBLANES = 8
_TARGET_TILE_BYTES = 4 << 20  # ~4 MiB per input tile (f32 worst case); v7x-safe.


def _choose_rows(b: int, h: int, w: int, max_itemsize: int) -> int:
    """Rows per H-block: a multiple of 8 (<= H) sized for ~_TARGET_TILE_BYTES."""
    if h < _SUBLANES:
        return h  # block dim == full array dim is always legal
    rows = _TARGET_TILE_BYTES // max(1, b * w * max_itemsize)
    rows = (rows // _SUBLANES) * _SUBLANES
    return max(_SUBLANES, min(rows, (h // _SUBLANES) * _SUBLANES))


@jax.jit
def my_criterion(input, target, pixel_weight, mask):
    """loss = mean_b( sum_{h,w} |input - target| * mask ); pixel_weight unused."""
    del pixel_weight  # Reference forward never reads it -> never DMA'd.

    pred, tgt, msk = input, target, mask
    assert pred.shape == tgt.shape == msk.shape and pred.ndim == 3, (
        "MyCriterion expects (B, H, W) inputs")
    b, h, w = pred.shape

    max_item = max(x.dtype.itemsize for x in (pred, tgt, msk))
    th = _choose_rows(b, h, w, max_item)
    n_blocks = -(-h // th)
    ragged = (h % th) != 0
    th_pad = -(-th // _SUBLANES) * _SUBLANES  # differs from th only when h < 8

    def kernel(p_ref, t_ref, m_ref, out_ref):
        # Up-cast right after the load: native dtypes over HBM, f32 arithmetic
        # in vregs (matches the fp32 PyTorch reference; required on v5e).
        p = p_ref[...].astype(jnp.float32)
        t = t_ref[...].astype(jnp.float32)
        m = m_ref[...].astype(jnp.float32)
        v = jnp.abs(p - t) * m                               # (b, th, w), pure VPU

        if ragged:
            # Last H-block is partially out of bounds: zero the garbage rows
            # (use where, not multiply, so inf/NaN garbage cannot leak through).
            row = lax.broadcasted_iota(jnp.int32, (1, th, 1), 1)
            valid = (pl.program_id(0) * th + row) < h
            v = jnp.where(valid, v, 0.0)

        if th_pad != th:                                     # only when h < 8
            v = jnp.pad(v, ((0, 0), (0, th_pad - th), (0, 0)))

        # Fold th rows into 8 sublanes with element-wise vreg adds (no XLU).
        out_ref[...] = jnp.sum(
            v.reshape(b, th_pad // _SUBLANES, _SUBLANES, w), axis=1)

    in_spec = pl.BlockSpec((b, th, w), lambda i: (0, i, 0))
    out_spec = pl.BlockSpec((pl.Squeezed(), b, _SUBLANES, w),
                            lambda i: (i, 0, 0, 0))

    # VMEM budget derived from actual tile bytes (double-buffered inputs +
    # output blocks + elementwise-temporary headroom), not a hard-coded 48 MiB.
    tile_in_bytes = sum(b * th * w * x.dtype.itemsize for x in (pred, tgt, msk))
    out_blk_bytes = b * _SUBLANES * w * 4
    temp_bytes = 3 * b * th * w * 4
    vmem_need = 2 * tile_in_bytes + 2 * out_blk_bytes + temp_bytes + (2 << 20)
    vmem_limit = int(min(max(vmem_need, 16 << 20), 100 << 20))

    cost = pl.CostEstimate(
        flops=4 * b * h * w,
        transcendentals=0,
        bytes_accessed=int(
            b * h * w * sum(x.dtype.itemsize for x in (pred, tgt, msk))
            + n_blocks * out_blk_bytes),
    )

    partial = pl.pallas_call(
        kernel,
        out_shape=jax.ShapeDtypeStruct((n_blocks, b, _SUBLANES, w), jnp.float32),
        grid_spec=pltpu.PrefetchScalarGridSpec(
            num_scalar_prefetch=0,
            grid=(n_blocks,),
            in_specs=[in_spec, in_spec, in_spec],
            out_specs=out_spec,
        ),
        compiler_params=pltpu.CompilerParams(
            dimension_semantics=("parallel",),
            vmem_limit_bytes=vmem_limit,
        ),
        cost_estimate=cost,
    )(pred, tgt, msk)

    # Tiny (n_blocks, B, 8, W) f32 reduction + batch mean in plain JAX.
    # mean_b(sum_hw) == total_sum / B.
    return jnp.sum(partial) / b


if __name__ == "__main__":
    key = jax.random.PRNGKey(0)
    k1, k2, k3, k4 = jax.random.split(key, 4)

    # Shapes consistent with the enhancer module: (B, H, W) maps.
    B, H, W = 2, 16, 16
    pred = jax.random.normal(k1, (B, H, W), dtype=jnp.float32)
    target = jax.random.normal(k2, (B, H, W), dtype=jnp.float32)
    pixel_weight = jax.random.uniform(k3, (B, H, W), dtype=jnp.float32)
    mask = jax.random.uniform(k4, (B, H, W), dtype=jnp.float32)

    loss = jax.block_until_ready(my_criterion(pred, target, pixel_weight, mask))
    ref = jnp.mean(jnp.sum(jnp.abs(pred - target) * mask, axis=(1, 2)))
    assert jnp.allclose(loss, ref, rtol=1e-4, atol=1e-5), (float(loss), float(ref))

    # Second config: native bf16 inputs + ragged H (exercises the in-kernel
    # up-cast and the tail-row masking path; no wrapper pad/cast copies).
    B2, H2, W2 = 3, 37, 48
    k5, k6, k7 = jax.random.split(k4, 3)
    p2 = jax.random.normal(k5, (B2, H2, W2), dtype=jnp.bfloat16)
    t2 = jax.random.normal(k6, (B2, H2, W2), dtype=jnp.bfloat16)
    m2 = jax.random.uniform(k7, (B2, H2, W2), dtype=jnp.float32)
    loss2 = jax.block_until_ready(my_criterion(p2, t2, jnp.zeros_like(m2), m2))
    ref2 = jnp.mean(jnp.sum(
        jnp.abs(p2.astype(jnp.float32) - t2.astype(jnp.float32)) * m2,
        axis=(1, 2)))
    assert jnp.allclose(loss2, ref2, rtol=1e-4, atol=1e-4), (float(loss2), float(ref2))

    print("KERNEL_OK")
</pallas_src>

<mosaic_0001>
module attributes {stable_mosaic.version = 11 : i64} {
  func.func @kernel(%arg0: i32, %arg1: memref<2x16x16xf32, #tpu.memory_space<vmem>>, %arg2: memref<2x16x16xf32, #tpu.memory_space<vmem>>, %arg3: memref<2x16x16xf32, #tpu.memory_space<vmem>>, %arg4: memref<1x2x8x16xf32, #tpu.memory_space<vmem>>) attributes {dimension_semantics = [#tpu.dimension_semantics<parallel>], iteration_bounds = array<i64: 1>, scalar_prefetch = 0 : i64, scratch_operands = 0 : i64, tpu.core_type = #tpu.core_type<tc>, window_params = [{transform_indices = @transform_0, window_bounds = array<i64: 2, 16, 16>}, {transform_indices = @transform_1, window_bounds = array<i64: 2, 16, 16>}, {transform_indices = @transform_2, window_bounds = array<i64: 2, 16, 16>}, {transform_indices = @transform_3, window_bounds = array<i64: 1, 2, 8, 16>}]} {
    %c0 = arith.constant 0 : index
    %c0_0 = arith.constant 0 : index
    %c0_1 = arith.constant 0 : index
    %0 = vector.load %arg1[%c0, %c0_0, %c0_1] : memref<2x16x16xf32, #tpu.memory_space<vmem>>, vector<2x16x16xf32>
    %c0_2 = arith.constant 0 : index
    %c0_3 = arith.constant 0 : index
    %c0_4 = arith.constant 0 : index
    %1 = vector.load %arg2[%c0_2, %c0_3, %c0_4] : memref<2x16x16xf32, #tpu.memory_space<vmem>>, vector<2x16x16xf32>
    %c0_5 = arith.constant 0 : index
    %c0_6 = arith.constant 0 : index
    %c0_7 = arith.constant 0 : index
    %2 = vector.load %arg3[%c0_5, %c0_6, %c0_7] : memref<2x16x16xf32, #tpu.memory_space<vmem>>, vector<2x16x16xf32>
    %3 = arith.subf %0, %1 : vector<2x16x16xf32>
    %4 = math.absf %3 : vector<2x16x16xf32>
    %5 = arith.mulf %4, %2 : vector<2x16x16xf32>
    %6 = vector.shape_cast %5 : vector<2x16x16xf32> to vector<2x2x8x16xf32>
    %cst = arith.constant dense<0.000000e+00> : vector<2x8x16xf32>
    %7 = vector.multi_reduction <add>, %6, %cst [1] : vector<2x2x8x16xf32> to vector<2x8x16xf32>
    %c0_8 = arith.constant 0 : index
    %c0_9 = arith.constant 0 : index
    %c0_10 = arith.constant 0 : index
    %c0_11 = arith.constant 0 : index
    %8 = vector.load %arg4[%c0_8, %c0_9, %c0_10, %c0_11] : memref<1x2x8x16xf32, #tpu.memory_space<vmem>>, vector<1x2x8x16xf32>
    %9 = vector.shape_cast %8 : vector<1x2x8x16xf32> to vector<2x8x16xf32>
    %10 = vector.shape_cast %7 : vector<2x8x16xf32> to vector<1x2x8x16xf32>
    tpu.vector_store %arg4[%c0_8, %c0_9, %c0_10, %c0_11], %10 {strides = array<i32>} : memref<1x2x8x16xf32, #tpu.memory_space<vmem>>, vector<1x2x8x16xf32>,
    return
  }
  func.func @transform_0(%arg0: i32) -> (i32, i32, i32) {
    %c0_i32 = arith.constant 0 : i32
    %c0_i32_0 = arith.constant 0 : i32
    %c0_i32_1 = arith.constant 0 : i32
    return %c0_i32, %arg0, %c0_i32_0 : i32, i32, i32
  }
  func.func @transform_1(%arg0: i32) -> (i32, i32, i32) {
    %c0_i32 = arith.constant 0 : i32
    %c0_i32_0 = arith.constant 0 : i32
    %c0_i32_1 = arith.constant 0 : i32
    return %c0_i32, %arg0, %c0_i32_0 : i32, i32, i32
  }
  func.func @transform_2(%arg0: i32) -> (i32, i32, i32) {
    %c0_i32 = arith.constant 0 : i32
    %c0_i32_0 = arith.constant 0 : i32
    %c0_i32_1 = arith.constant 0 : i32
    return %c0_i32, %arg0, %c0_i32_0 : i32, i32, i32
  }
  func.func @transform_3(%arg0: i32) -> (i32, i32, i32, i32) {
    %c0_i32 = arith.constant 0 : i32
    %c0_i32_0 = arith.constant 0 : i32
    %c0_i32_1 = arith.constant 0 : i32
    %c0_i32_2 = arith.constant 0 : i32
    return %arg0, %c0_i32, %c0_i32_0, %c0_i32_1 : i32, i32, i32, i32
  }
}

</mosaic_0001>

<llo_original>
// kernel: my_criterion.1
$region0: #{my_criterion.1}
  #allocation0 [shape = 'u32[]', space=smem, size = 0x4, offset = 0x4, fixed_abs, tag = 'smem constant byte address 0x4 - core index']
  #allocation1 [shape = 'u32[72,128]{1,0:T(1,128)}', space=vmem, size = 0x9000, scoped, tag = 'internal scratch']
  %s0 = inlined_call_operand.hbm [shape: f32[2,16,16], index: 0, kind: input, shape index: {}]
  %s1 = inlined_call_operand.hbm [shape: f32[2,16,16], index: 1, kind: input, shape index: {}]
  %s2 = inlined_call_operand.hbm [shape: f32[2,16,16], index: 2, kind: input, shape index: {}]
  %s3 = inlined_call_operand.vmem [shape: f32[1,2,8,16], index: 3, kind: output, shape index: {}]
  %s4 = sld [smem:[#allocation0]]
  $region34: #{my_criterion.1} parent=0
    _
  %s6 = ssub.s32 1, %s4
  %s7 = scalar_select 0, %s6, %s4
  $region1: #{my_criterion.1} parent=0
    #allocation2 [shape = 'u8[16384]{0}', space=vmem, size = 0x4000, scoped, tag = 'input window, operand 0, single buffered']
    #allocation3 [shape = 's32[1]{0}', space=sflag, size = 0x4, scoped, tag = 'scoped memory for my_criterion.1']
    #allocation4 [shape = 'u8[16384]{0}', space=vmem, size = 0x4000, scoped, tag = 'input window, operand 1, single buffered']
    #allocation5 [shape = 's32[1]{0}', space=sflag, size = 0x4, scoped, tag = 'scoped memory for my_criterion.1']
    #allocation6 [shape = 'u8[16384]{0}', space=vmem, size = 0x4000, scoped, tag = 'input window, operand 2, single buffered']
    %8 = vsyncpa [#allocation3], 0
    %9 = vsyncpa [#allocation5], 0
    // Predicated region
    $region2: #{my_criterion.1} parent=1 // pred_check
      _
    $region3: #{my_criterion.1} parent=1 // pred_check_branch
      %11 = sbr.rel (0) target = $region5
    $region4: #{my_criterion.1} parent=1 // pred_region
      %13 = vsyncadd [#allocation3], 0
      %s14 = sshll.u32 %s0, 4
      %s15 = int_to_ptr.hbm [resolvable:$true] %s14
      %s16 = sshll.u32 [#allocation2], 4
      %s17 = int_to_ptr.vmem [resolvable:$true] %s16
      %22 = dma.hbm_to_vmem [thread:$0]  %s15, 512, %s17, [#allocation3], 128, 128, 8
    $region5: #{my_criterion.1} parent=1 // pred_fallthru
      _
    // Predicated region
    $region6: #{my_criterion.1} parent=1 // pred_check
      _
    $region7: #{my_criterion.1} parent=1 // pred_check_branch
      %24 = sbr.rel (0) target = $region9
    $region8: #{my_criterion.1} parent=1 // pred_region
      %26 = vsyncadd [#allocation5], 0
      %s27 = sshll.u32 %s1, 4
      %s28 = int_to_ptr.hbm [resolvable:$true] %s27
      %s29 = sshll.u32 [#allocation4], 4
      %s30 = int_to_ptr.vmem [resolvable:$true] %s29
      %35 = dma.hbm_to_vmem [thread:$0]  %s28, 512, %s30, [#allocation5], 128, 128, 8
    $region9: #{my_criterion.1} parent=1 // pred_fallthru
      _
    // Predicated region
    $region10: #{my_criterion.1} parent=1 // pred_check
      _
    $region11: #{my_criterion.1} parent=1 // pred_check_branch
      %37 = sbr.rel (0) target = $region13
    $region12: #{my_criterion.1} parent=1 // pred_region
      %39 = vsyncadd [#allocation5], 0
      %s40 = sshll.u32 %s2, 4
      %s41 = int_to_ptr.hbm [resolvable:$true] %s40
      %s42 = sshll.u32 [#allocation6], 4
      %s43 = int_to_ptr.vmem [resolvable:$true] %s42
      %48 = dma.hbm_to_vmem [thread:$0]  %s41, 512, %s43, [#allocation5], 128, 128, 8
    $region13: #{my_criterion.1} parent=1 // pred_fallthru
      _
    // Predicated region
    $region14: #{my_criterion.1} parent=1 // pred_check
      _
    $region15: #{my_criterion.1} parent=1 // pred_check_branch
      %50 = sbr.rel (0) target = $region17
    $region16: #{my_criterion.1} parent=1 // pred_region
      %52 = dma.done [#allocation3], 512
    $region17: #{my_criterion.1} parent=1 // pred_fallthru
      _
    // Predicated region
    $region18: #{my_criterion.1} parent=1 // pred_check
      _
    $region19: #{my_criterion.1} parent=1 // pred_check_branch
      %54 = sbr.rel (0) target = $region21
    $region20: #{my_criterion.1} parent=1 // pred_region
      %56 = dma.done [#allocation5], 512
    $region21: #{my_criterion.1} parent=1 // pred_fallthru
      _
    // Predicated region
    $region22: #{my_criterion.1} parent=1 // pred_check
      _
    $region23: #{my_criterion.1} parent=1 // pred_check_branch
      %58 = sbr.rel (0) target = $region25
    $region24: #{my_criterion.1} parent=1 // pred_region
      %60 = dma.done [#allocation5], 512
    $region25: #{my_criterion.1} parent=1 // pred_fallthru
      _
    %v61 = vld [vmem:[#allocation2] sm:$0xff]
    %v62 = vld [vmem:[#allocation2 + $0x8] sm:$0xff]
    %v63 = vld [vmem:[#allocation2 + $0x10] sm:$0xff]
    %v64 = vld [vmem:[#allocation2 + $0x18] sm:$0xff]
    %v65 = vld [vmem:[#allocation4] sm:$0xff]
    %v66 = vld [vmem:[#allocation4 + $0x8] sm:$0xff]
    %v67 = vld [vmem:[#allocation4 + $0x10] sm:$0xff]
    %v68 = vld [vmem:[#allocation4 + $0x18] sm:$0xff]
    %v69 = vld [vmem:[#allocation6] sm:$0xff]
    %v70 = vld [vmem:[#allocation6 + $0x8] sm:$0xff]
    %v71 = vld [vmem:[#allocation6 + $0x10] sm:$0xff]
    %v72 = vld [vmem:[#allocation6 + $0x18] sm:$0xff]
    %v73 = vsub.f32 %v61, %v65
    %v74 = vsub.f32 %v62, %v66
    %v75 = vsub.f32 %v63, %v67
    %v76 = vsub.f32 %v64, %v68
    %v77 = vand.u32 2147483647, %v73
    %v78 = vand.u32 2147483647, %v74
    %v79 = vand.u32 2147483647, %v75
    %v80 = vand.u32 2147483647, %v76
    %v81 = vmul.f32 %v77, %v69
    %v82 = vmul.f32 %v78, %v70
    %v83 = vmul.f32 %v79, %v71
    %v84 = vmul.f32 %v80, %v72
    %vm85 = vcmask 130048
    %v86 = vsel %vm85, %v81, 0.0
    %v87 = vsel %vm85, %v82, 0.0
    %v88 = vadd.f32 %v86, %v87
    %v89 = vsel %vm85, %v83, 0.0
    %v90 = vsel %vm85, %v84, 0.0
    %v91 = vadd.f32 %v89, %v90
    %92 = vst.msk [vmem:[%s3] sm:$0xff] %vm85, %v88
    %93 = vst.msk [vmem:[%s3 + $0x8] sm:$0xff] %vm85, %v91
    // Predicated region
    $region26: #{my_criterion.1} parent=1 // pred_check
      _
    $region27: #{my_criterion.1} parent=1 // pred_check_branch
      %95 = sbr.rel (0) target = $region29
    $region28: #{my_criterion.1} parent=1 // pred_region
      _
    $region29: #{my_criterion.1} parent=1 // pred_fallthru
      _
    // Predicated region
    $region30: #{my_criterion.1} parent=1 // pred_check
      _
    $region31: #{my_criterion.1} parent=1 // pred_check_branch
      %97 = sbr.rel (0) target = $region33
    $region32: #{my_criterion.1} parent=1 // pred_region
      _
    $region33: #{my_criterion.1} parent=1 // pred_fallthru
      _
    %98 = vsyncpa [#allocation3], 1
    %99 = vsyncpa [#allocation5], 1

</llo_original>
